<compile_context>
chip_gen: v7x
topology: tpu7x:2x2x1
jax: 0.10.0
libtpu: 0.0.40
codegen_flags: <defaults>
</compile_context>

<pallas_src>
import math

import jax
import jax.numpy as jnp
from jax.experimental import pallas as pl
from jax.experimental.pallas import tpu as pltpu


def _gcn_kernel(x_ref, adj_ref, w_ref, b_ref, o_ref):
    TB, N, F_in = x_ref.shape
    F_out = w_ref.shape[1]

    adj = adj_ref[...]                                             # (TB, N, N) bf16

    # Stage 1: cheap contraction first, g = adj @ x  (f32 MXU accumulation).
    g = jnp.einsum(
        "bnm,bmk->bnk", adj, x_ref[...], preferred_element_type=jnp.float32
    )                                                              # (TB, N, F_in) f32

    # Bias correction: relu(adj @ (xW - b)) == relu((adj @ x) @ W - rowsum(adj) * b)
    rowsum = jnp.sum(adj.astype(jnp.float32), axis=-1, keepdims=True)  # (TB, N, 1)

    # Stage 2: one GEMM over all TB*N rows against W (f32, f32 accumulation).
    h = jnp.dot(
        g.reshape(TB * N, F_in), w_ref[...], preferred_element_type=jnp.float32
    ).reshape(TB, N, F_out)

    out = h - rowsum * b_ref[...].reshape(1, 1, F_out)
    o_ref[...] = jnp.maximum(out, 0.0).astype(o_ref.dtype)


def _vmem_budget_bytes():
    """Chip-aware VMEM budget: 0.75 * capacity (48 MiB fallback ~ v7x-safe)."""
    try:
        info_fn = getattr(pltpu, "get_tpu_info", None)
        cap = info_fn().vmem_capacity_bytes if info_fn is not None else 64 * 1024 * 1024
    except Exception:
        cap = 64 * 1024 * 1024
    return int(0.75 * cap)


def _pick_batch_tile(B, N, F_in, F_out, in_bytes, budget_bytes):
    """Largest batch tile that fits the budget, capped to keep >= 2 grid steps."""
    per_b = (
        2 * (N * F_in + N * N) * in_bytes   # x, adj blocks (double-buffered)
        + 2 * N * F_out * 4                 # output block (double-buffered)
        + N * F_in * 4                      # g   (f32 intermediate)
        + 2 * N * F_out * 4                 # h and pre-ReLU product (f32)
        + N * 4                             # rowsum
    )
    fixed = 2 * (F_in * F_out * 4 + F_out * 4)  # grid-invariant W + bias
    tb_cap = (B + 1) // 2 if B > 1 else 1       # >= 2 grid steps for 2-TC chips (v7x)
    tb = max(1, min(tb_cap, (budget_bytes - fixed) // per_b))
    return int(min(tb, B))


def gcn_adj_forward(x, adj, weight, bias, *, batch_tile=None,
                    input_dtype=jnp.bfloat16):
    """x: (B,N,F_in) f32, adj: (B,N,N) f32, weight: (F_in,F_out), bias: (1,1,F_out)."""
    B, N, F_in = x.shape
    F_out = weight.shape[1]

    # bf16 inputs for the big DMA consumers; f32 accumulation inside the kernel.
    x_c = x.astype(input_dtype)
    adj_c = adj.astype(input_dtype)
    w_c = jnp.asarray(weight, jnp.float32)                  # tiny; consumed vs f32 acc
    b_c = jnp.asarray(bias, jnp.float32).reshape(1, F_out)

    in_bytes = jnp.dtype(input_dtype).itemsize
    budget = _vmem_budget_bytes()
    TB = batch_tile if batch_tile is not None else _pick_batch_tile(
        B, N, F_in, F_out, in_bytes, budget)

    # cdiv grid + zero-padded batch (zeros are exact through adj@x, @W, bias, relu).
    n_steps = -(-B // TB)
    B_pad = n_steps * TB
    if B_pad != B:
        x_c = jnp.pad(x_c, ((0, B_pad - B), (0, 0), (0, 0)))
        adj_c = jnp.pad(adj_c, ((0, B_pad - B), (0, 0), (0, 0)))

    cp_cls = getattr(pltpu, "CompilerParams", None) or getattr(
        pltpu, "TPUCompilerParams")
    compiler_params = cp_cls(
        dimension_semantics=("parallel",),
        vmem_limit_bytes=budget,
    )

    out = pl.pallas_call(
        _gcn_kernel,
        out_shape=jax.ShapeDtypeStruct((B_pad, N, F_out), jnp.float32),
        grid_spec=pltpu.PrefetchScalarGridSpec(
            num_scalar_prefetch=0,
            grid=(n_steps,),
            in_specs=[
                pl.BlockSpec((TB, N, F_in), lambda b: (b, 0, 0)),
                pl.BlockSpec((TB, N, N), lambda b: (b, 0, 0)),
                pl.BlockSpec((F_in, F_out), lambda b: (0, 0)),   # grid-invariant
                pl.BlockSpec((1, F_out), lambda b: (0, 0)),      # grid-invariant
            ],
            out_specs=pl.BlockSpec((TB, N, F_out), lambda b: (b, 0, 0)),
        ),
        compiler_params=compiler_params,
    )(x_c, adj_c, w_c, b_c)

    return out[:B] if B_pad != B else out


def _xavier_uniform(key, shape, gain):
    fan_in, fan_out = shape
    bound = gain * math.sqrt(6.0 / (fan_in + fan_out))
    return jax.random.uniform(key, shape, jnp.float32, -bound, bound)


if __name__ == "__main__":
    # Small deterministic example consistent with the module:
    # batch=2 graphs, N=16 nodes, in_features=8, out_features=32.
    B, N, F_in, F_out = 2, 16, 8, 32

    key = jax.random.PRNGKey(0)
    k_x, k_adj, k_w, k_b = jax.random.split(key, 4)

    x = jax.random.normal(k_x, (B, N, F_in), dtype=jnp.float32)
    adj = jax.random.uniform(k_adj, (B, N, N), dtype=jnp.float32)

    # Parameters initialized as in __init__ (xavier_uniform gain=1.414, zero bias).
    weight = _xavier_uniform(k_w, (F_in, F_out), gain=1.414)
    bias = jnp.zeros((1, 1, F_out), dtype=jnp.float32)

    out = gcn_adj_forward(x, adj, weight, bias)
    jax.block_until_ready(out)

    # Pure-JAX reference of the module semantics (f32). bf16 input casts and the
    # algebraic reorder introduce only small fp differences -> loosened tolerance.
    ref = jnp.maximum(jnp.matmul(adj, jnp.matmul(x, weight) - bias), 0.0)
    assert out.shape == (B, N, F_out)
    assert jnp.allclose(out, ref, atol=5e-2, rtol=5e-2), float(
        jnp.max(jnp.abs(out - ref)))

    # Also exercise the rowsum(adj)*bias correction with a non-zero bias.
    bias_nz = 0.1 * jax.random.normal(k_b, (1, 1, F_out), dtype=jnp.float32)
    out_nz = gcn_adj_forward(x, adj, weight, bias_nz)
    jax.block_until_ready(out_nz)
    ref_nz = jnp.maximum(jnp.matmul(adj, jnp.matmul(x, weight) - bias_nz), 0.0)
    assert jnp.allclose(out_nz, ref_nz, atol=5e-2, rtol=5e-2), float(
        jnp.max(jnp.abs(out_nz - ref_nz)))

    print("KERNEL_OK")
</pallas_src>

<mosaic_0001>
module attributes {stable_mosaic.version = 11 : i64} {
  func.func @_gcn_kernel(%arg0: i32, %arg1: memref<1x16x8xbf16, #tpu.memory_space<vmem>>, %arg2: memref<1x16x16xbf16, #tpu.memory_space<vmem>>, %arg3: memref<8x32xf32, #tpu.memory_space<vmem>>, %arg4: memref<1x32xf32, #tpu.memory_space<vmem>>, %arg5: memref<1x16x32xf32, #tpu.memory_space<vmem>>) attributes {dimension_semantics = [#tpu.dimension_semantics<parallel>], iteration_bounds = array<i64: 2>, scalar_prefetch = 0 : i64, scratch_operands = 0 : i64, tpu.core_type = #tpu.core_type<tc>, window_params = [{transform_indices = @transform_0, window_bounds = array<i64: 1, 16, 8>}, {transform_indices = @transform_1, window_bounds = array<i64: 1, 16, 16>}, {pipeline_mode = #tpu.pipeline_mode<synchronous>, transform_indices = @transform_2, window_bounds = array<i64: 8, 32>}, {pipeline_mode = #tpu.pipeline_mode<synchronous>, transform_indices = @transform_3, window_bounds = array<i64: 1, 32>}, {transform_indices = @transform_4, window_bounds = array<i64: 1, 16, 32>}]} {
    %c0 = arith.constant 0 : index
    %c0_0 = arith.constant 0 : index
    %c0_1 = arith.constant 0 : index
    %0 = vector.load %arg2[%c0, %c0_0, %c0_1] : memref<1x16x16xbf16, #tpu.memory_space<vmem>>, vector<1x16x16xbf16>
    %c0_2 = arith.constant 0 : index
    %c0_3 = arith.constant 0 : index
    %c0_4 = arith.constant 0 : index
    %1 = vector.load %arg1[%c0_2, %c0_3, %c0_4] : memref<1x16x8xbf16, #tpu.memory_space<vmem>>, vector<1x16x8xbf16>
    "tpu.trace_start"() <{level = 10 : i32, message = "bnm,bmk->bnk"}> : () -> ()
    %cst = arith.constant dense<0.000000e+00> : vector<1x16x8xf32>
    %2 = tpu.matmul %0, %1, %cst {dimension_numbers = #tpu.dot_dimension_numbers<[2], [1], [1], [2], [0, 0, 0, 1, 1, 2], [0], [0]>} : vector<1x16x16xbf16>, vector<1x16x8xbf16>, vector<1x16x8xf32> -> vector<1x16x8xf32>
    "tpu.trace_stop"() : () -> ()
    %3 = arith.extf %0 : vector<1x16x16xbf16> to vector<1x16x16xf32>
    %cst_5 = arith.constant dense<0.000000e+00> : vector<1x16xf32>
    %4 = vector.multi_reduction <add>, %3, %cst_5 [2] : vector<1x16x16xf32> to vector<1x16xf32>
    %5 = vector.shape_cast %4 : vector<1x16xf32> to vector<1x16x1xf32>
    %6 = vector.shape_cast %2 : vector<1x16x8xf32> to vector<16x8xf32>
    %c0_6 = arith.constant 0 : index
    %c0_7 = arith.constant 0 : index
    %7 = vector.load %arg3[%c0_6, %c0_7] : memref<8x32xf32, #tpu.memory_space<vmem>>, vector<8x32xf32>
    %cst_8 = arith.constant dense<0.000000e+00> : vector<16x32xf32>
    %8 = tpu.matmul %6, %7, %cst_8 {dimension_numbers = #tpu.dot_dimension_numbers<[1], [0], [0], [1], [0, 0, 1, 1], [], []>} : vector<16x8xf32>, vector<8x32xf32>, vector<16x32xf32> -> vector<16x32xf32>
    %9 = vector.shape_cast %8 : vector<16x32xf32> to vector<1x16x32xf32>
    %c0_9 = arith.constant 0 : index
    %c0_10 = arith.constant 0 : index
    %10 = vector.load %arg4[%c0_9, %c0_10] : memref<1x32xf32, #tpu.memory_space<vmem>>, vector<1x32xf32>
    %11 = vector.shape_cast %10 : vector<1x32xf32> to vector<1x1x32xf32>
    %12 = vector.broadcast %5 : vector<1x16x1xf32> to vector<1x16x32xf32>
    %13 = vector.broadcast %11 : vector<1x1x32xf32> to vector<1x16x32xf32>
    %14 = arith.mulf %12, %13 : vector<1x16x32xf32>
    %15 = arith.subf %9, %14 : vector<1x16x32xf32>
    %cst_11 = arith.constant 0.000000e+00 : f32
    %16 = vector.broadcast %cst_11 : f32 to vector<1x16x32xf32>
    %17 = arith.maximumf %15, %16 : vector<1x16x32xf32>
    %c0_12 = arith.constant 0 : index
    %c0_13 = arith.constant 0 : index
    %c0_14 = arith.constant 0 : index
    %18 = vector.load %arg5[%c0_12, %c0_13, %c0_14] : memref<1x16x32xf32, #tpu.memory_space<vmem>>, vector<1x16x32xf32>
    tpu.vector_store %arg5[%c0_12, %c0_13, %c0_14], %17 {strides = array<i32>} : memref<1x16x32xf32, #tpu.memory_space<vmem>>, vector<1x16x32xf32>,
    return
  }
  func.func @transform_0(%arg0: i32) -> (i32, i32, i32) {
    %c0_i32 = arith.constant 0 : i32
    %c0_i32_0 = arith.constant 0 : i32
    %c0_i32_1 = arith.constant 0 : i32
    return %arg0, %c0_i32, %c0_i32_0 : i32, i32, i32
  }
  func.func @transform_1(%arg0: i32) -> (i32, i32, i32) {
    %c0_i32 = arith.constant 0 : i32
    %c0_i32_0 = arith.constant 0 : i32
    %c0_i32_1 = arith.constant 0 : i32
    return %arg0, %c0_i32, %c0_i32_0 : i32, i32, i32
  }
  func.func @transform_2(%arg0: i32) -> (i32, i32) {
    %c0_i32 = arith.constant 0 : i32
    %c0_i32_0 = arith.constant 0 : i32
    %c0_i32_1 = arith.constant 0 : i32
    return %c0_i32, %c0_i32_0 : i32, i32
  }
  func.func @transform_3(%arg0: i32) -> (i32, i32) {
    %c0_i32 = arith.constant 0 : i32
    %c0_i32_0 = arith.constant 0 : i32
    %c0_i32_1 = arith.constant 0 : i32
    return %c0_i32, %c0_i32_0 : i32, i32
  }
  func.func @transform_4(%arg0: i32) -> (i32, i32, i32) {
    %c0_i32 = arith.constant 0 : i32
    %c0_i32_0 = arith.constant 0 : i32
    %c0_i32_1 = arith.constant 0 : i32
    return %arg0, %c0_i32, %c0_i32_0 : i32, i32, i32
  }
}

</mosaic_0001>

<llo_original>
// kernel: tpu_custom_call.1
$region0: #{tpu_custom_call.1}
  #allocation0 [shape = 'u32[]', space=smem, size = 0x4, offset = 0x4, fixed_abs, tag = 'smem constant byte address 0x4 - core index']
  #allocation1 [shape = 'u32[144,128]{1,0:T(1,128)}', space=vmem, size = 0x12000, scoped, tag = 'internal scratch']
  %s0 = inlined_call_operand.vmem [shape: bf16[2,16,8], index: 0, kind: input, shape index: {}]
  %s1 = inlined_call_operand.vmem [shape: bf16[2,16,16], index: 1, kind: input, shape index: {}]
  %s2 = inlined_call_operand.vmem [shape: f32[8,32], index: 2, kind: input, shape index: {}]
  %s3 = inlined_call_operand.vmem [shape: f32[1,32], index: 3, kind: input, shape index: {}]
  %s4 = inlined_call_operand.hbm [shape: f32[2,16,32], index: 4, kind: output, shape index: {}]
  %s5 = sld [smem:[#allocation0]]
  $region49: #{tpu_custom_call.1} parent=0
    _
  %s7 = ssub.s32 1, %s5
  %s8 = scalar_select 0, %s7, %s5
  $region1: #{tpu_custom_call.1} parent=0
    #allocation2 [shape = 'u8[16384]{0}', space=vmem, size = 0x4000, scoped, tag = 'output window, operand 0']
    #allocation3 [shape = 's32[2]{0}', space=sflag, size = 0x8, scoped, tag = 'scoped memory for tpu_custom_call.1']
    %9 = vsyncpa [#allocation3], 0
    %s10 = scalar_lea.sflag [#allocation3], 1
    %11 = vsyncpa %s10, 0
    loop: start=0, step=1, limit=4
    $region2: #{tpu_custom_call.1} parent=1 // loop_pre_header
      _
    $region3: #{tpu_custom_call.1} parent=1 // loop_header
      %s13 = sphi 0, %s17
      %p14 = scmp.ge.s32.totalorder %s13, 4
      %s23 = sphi 0, %s25
      %s26 = sphi 0, %s23
      %s27 = sphi 0, %s26
      %s43 = sphi 0, %s27
      %s49 = sphi 0, %s51
      %s52 = sphi 0, %s49
      %s53 = sphi 0, %s52
      %s69 = sphi 0, %s53
      %s73 = sphi 0, %s73
      %s75 = sphi 0, %s73
      %s76 = sphi 0, %s75
      %s90 = sphi 0, %s76
      %s94 = sphi 0, %s94
      %s96 = sphi 0, %s94
      %s97 = sphi 0, %s96
      %s111 = sphi 0, %s97
      %s117 = sphi 0, %s119
      %s120 = sphi 0, %s117
      %s121 = sphi 0, %s120
      %s137 = sphi 0, %s121
    $region4: #{tpu_custom_call.1} parent=1 // loop_header_branch
      %16 = sbr.rel (%p14) target = $region8
    $region5: #{tpu_custom_call.1} parent=1 // loop_body
      %s18 = ssub.s32 %s13, 1
      %s19 = ssub.s32 %s13, 2
      %s20 = sadd.s32 %s13, 1
      %s21 = ssub.s32 %s13, %s20
      %p22 = scmp.eq.s32.totalorder %s21, 0
      %s24 = sadd.s32 %s23, 1
      %s25 = scalar_select %p22, %s23, %s24
      %p28 = pneg %p22
      %p29 = scmp.eq.s32.totalorder %s13, 1
      %p30 = por %p28, %p29
      %p31 = scmp.ne.s32.totalorder %s23, %s26
      %p32 = scmp.eq.s32.totalorder %s13, 0
      %p33 = por %p31, %p32
      %p34 = scmp.ne.s32.totalorder %s23, %s26
      %p35 = scmp.eq.s32.totalorder %s18, 1
      %p36 = por %p34, %p35
      %p37 = scmp.ne.s32.totalorder %s26, %s27
      %p38 = scmp.eq.s32.totalorder %s18, 0
      %p39 = por %p37, %p38
      %p40 = scmp.ne.s32.totalorder %s26, %s27
      %p41 = scmp.eq.s32.totalorder %s19, 1
      %p42 = por %p40, %p41
      %p44 = scmp.ne.s32.totalorder %s27, %s43
      %p45 = scmp.eq.s32.totalorder %s19, 0
      %p46 = por %p44, %p45
      %s47 = ssub.s32 %s13, %s20
      %p48 = scmp.eq.s32.totalorder %s47, 0
      %s50 = sadd.s32 %s49, 1
      %s51 = scalar_select %p48, %s49, %s50
      %p54 = pneg %p48
      %p55 = scmp.eq.s32.totalorder %s13, 1
      %p56 = por %p54, %p55
      %p57 = scmp.ne.s32.totalorder %s49, %s52
      %p58 = scmp.eq.s32.totalorder %s13, 0
      %p59 = por %p57, %p58
      %p60 = scmp.ne.s32.totalorder %s49, %s52
      %p61 = scmp.eq.s32.totalorder %s18, 1
      %p62 = por %p60, %p61
      %p63 = scmp.ne.s32.totalorder %s52, %s53
      %p64 = scmp.eq.s32.totalorder %s18, 0
      %p65 = por %p63, %p64
      %p66 = scmp.ne.s32.totalorder %s52, %s53
      %p67 = scmp.eq.s32.totalorder %s19, 1
      %p68 = por %p66, %p67
      %p70 = scmp.ne.s32.totalorder %s53, %s69
      %p71 = scmp.eq.s32.totalorder %s19, 0
      %p72 = por %p70, %p71
      %s74 = sadd.s32 %s73, 1
      %p77 = scmp.eq.s32.totalorder %s13, 1
      %p78 = scmp.ne.s32.totalorder %s73, %s75
      %p79 = scmp.eq.s32.totalorder %s13, 0
      %p80 = por %p78, %p79
      %p81 = scmp.ne.s32.totalorder %s73, %s75
      %p82 = scmp.eq.s32.totalorder %s18, 1
      %p83 = por %p81, %p82
      %p84 = scmp.ne.s32.totalorder %s75, %s76
      %p85 = scmp.eq.s32.totalorder %s18, 0
      %p86 = por %p84, %p85
      %p87 = scmp.ne.s32.totalorder %s75, %s76
      %p88 = scmp.eq.s32.totalorder %s19, 1
      %p89 = por %p87, %p88
      %p91 = scmp.ne.s32.totalorder %s76, %s90
      %p92 = scmp.eq.s32.totalorder %s19, 0
      %p93 = por %p91, %p92
      %s95 = sadd.s32 %s94, 1
      %p98 = scmp.eq.s32.totalorder %s13, 1
      %p99 = scmp.ne.s32.totalorder %s94, %s96
      %p100 = scmp.eq.s32.totalorder %s13, 0
      %p101 = por %p99, %p100
      %p102 = scmp.ne.s32.totalorder %s94, %s96
      %p103 = scmp.eq.s32.totalorder %s18, 1
      %p104 = por %p102, %p103
      %p105 = scmp.ne.s32.totalorder %s96, %s97
      %p106 = scmp.eq.s32.totalorder %s18, 0
      %p107 = por %p105, %p106
      %p108 = scmp.ne.s32.totalorder %s96, %s97
      %p109 = scmp.eq.s32.totalorder %s19, 1
      %p110 = por %p108, %p109
      %p112 = scmp.ne.s32.totalorder %s97, %s111
      %p113 = scmp.eq.s32.totalorder %s19, 0
      %p114 = por %p112, %p113
      %s115 = ssub.s32 %s13, %s20
      %p116 = scmp.eq.s32.totalorder %s115, 0
      %s118 = sadd.s32 %s117, 1
      %s119 = scalar_select %p116, %s117, %s118
      %p122 = pneg %p116
      %p123 = scmp.eq.s32.totalorder %s13, 1
      %p124 = por %p122, %p123
      %p125 = scmp.ne.s32.totalorder %s117, %s120
      %p126 = scmp.eq.s32.totalorder %s13, 0
      %p127 = por %p125, %p126
      %p128 = scmp.ne.s32.totalorder %s117, %s120
      %p129 = scmp.eq.s32.totalorder %s18, 1
      %p130 = por %p128, %p129
      %p131 = scmp.ne.s32.totalorder %s120, %s121
      %p132 = scmp.eq.s32.totalorder %s18, 0
      %p133 = por %p131, %p132
      %p134 = scmp.ne.s32.totalorder %s120, %s121
      %p135 = scmp.eq.s32.totalorder %s19, 1
      %p136 = por %p134, %p135
      %p138 = scmp.ne.s32.totalorder %s121, %s137
      %p139 = scmp.eq.s32.totalorder %s19, 0
      %p140 = por %p138, %p139
      %p141 = scmp.le.s32.totalorder 1, %s13
      %p142 = scmp.lt.s32.totalorder %s13, 3
      %p143 = pnand %p141, %p142
      %p144 = pneg %p143
      // Predicated region
      $region9: #{tpu_custom_call.1} parent=5 // pred_check
        _
      $region10: #{tpu_custom_call.1} parent=5 // pred_check_branch
        %146 = sbr.rel (%p143) target = $region12
      $region11: #{tpu_custom_call.1} parent=5 // pred_region
        %s147 = ssub.s32 %s13, 1
        // Predicated region
        $region13: #{tpu_custom_call.1} parent=11 // pred_check
          %p148 = pneg %p86
        $region14: #{tpu_custom_call.1} parent=11 // pred_check_branch
          %150 = sbr.rel (%p148) target = $region16
        $region15: #{tpu_custom_call.1} parent=11 // pred_region
          _
        $region16: #{tpu_custom_call.1} parent=11 // pred_fallthru
          _
        // Predicated region
        $region17: #{tpu_custom_call.1} parent=11 // pred_check
          %p151 = pneg %p107
        $region18: #{tpu_custom_call.1} parent=11 // pred_check_branch
          %153 = sbr.rel (%p151) target = $region20
        $region19: #{tpu_custom_call.1} parent=11 // pred_region
          _
        $region20: #{tpu_custom_call.1} parent=11 // pred_fallthru
          _
      $region12: #{tpu_custom_call.1} parent=5 // pred_fallthru
        _
      %p154 = scmp.lt.s32.totalorder %s13, 2
      // Predicated region
      $region21: #{tpu_custom_call.1} parent=5 // pred_check
        %p155 = pneg %p154
      $region22: #{tpu_custom_call.1} parent=5 // pred_check_branch
        %157 = sbr.rel (%p155) target = $region24
      $region23: #{tpu_custom_call.1} parent=5 // pred_region
        // Predicated region
        $region25: #{tpu_custom_call.1} parent=23 // pred_check
          %p158 = pneg %p33
        $region26: #{tpu_custom_call.1} parent=23 // pred_check_branch
          %160 = sbr.rel (%p158) target = $region28
        $region27: #{tpu_custom_call.1} parent=23 // pred_region
          %p161 = scmp.lt.s32.totalorder %s13, 1
          %s162 = scalar_select %p161, %s13, 1
          %s163 = smul.addr %s162, 2
          %s164 = smul.addr %s163, 4
          %s165 = scalar_lea.vmem %s0, %s164
        $region28: #{tpu_custom_call.1} parent=23 // pred_fallthru
          _
        // Predicated region
        $region29: #{tpu_custom_call.1} parent=23 // pred_check
          %p166 = pneg %p59
        $region30: #{tpu_custom_call.1} parent=23 // pred_check_branch
          %168 = sbr.rel (%p166) target = $region32
        $region31: #{tpu_custom_call.1} parent=23 // pred_region
          %p169 = scmp.lt.s32.totalorder %s13, 1
          %s170 = scalar_select %p169, %s13, 1
          %s171 = smul.addr %s170, 2
          %s172 = smul.addr %s171, 4
          %s173 = scalar_lea.vmem %s1, %s172
        $region32: #{tpu_custom_call.1} parent=23 // pred_fallthru
          _
      $region24: #{tpu_custom_call.1} parent=5 // pred_fallthru
        _
      %p174 = scmp.le.s32.totalorder 1, %s13
      %p175 = scmp.lt.s32.totalorder %s13, 3
      %p176 = pnand %p174, %p175
      %p177 = pneg %p176
      // Predicated region
      $region33: #{tpu_custom_call.1} parent=5 // pred_check
        _
      $region34: #{tpu_custom_call.1} parent=5 // pred_check_branch
        %179 = sbr.rel (%p176) target = $region36
      $region35: #{tpu_custom_call.1} parent=5 // pred_region
        %s180 = ssub.s32 %s13, 1
        %p181 = scmp.lt.s32.totalorder %s18, 1
        %s182 = scalar_select %p181, %s18, 1
        %s183 = smul.addr %s182, 2
        %s184 = smul.addr %s183, 4
        %s185 = scalar_lea.vmem %s0, %s184
        %p186 = pneg %p39
        %p187 = pneg %p36
        %p188 = scmp.lt.s32.totalorder %s18, 1
        %s189 = scalar_select %p188, %s18, 1
        %s190 = smul.addr %s189, 2
        %s191 = smul.addr %s190, 4
        %s192 = scalar_lea.vmem %s1, %s191
        %p193 = pneg %p65
        %p194 = pneg %p62
        %p195 = pneg %p86
        %p196 = pneg %p83
        %p197 = pneg %p107
        %p198 = pneg %p104
        %p199 = pneg %p133
        %p200 = pneg %p130
        %s201 = sand.u32 %s120, 1
        %s202 = scalar_lea.sflag [#allocation3], %s201
        %s203 = sand.u32 %s120, 1
        %s204 = smul.addr %s203, 16
        %s205 = scalar_lea.vmem [#allocation2], %s204
        %p206 = scmp.lt.s32.totalorder %s18, 1
        %s207 = scalar_select %p206, %s18, 1
        %s208 = smul.addr %s207, 2
        %s209 = smul.addr %s208, 4
        %s210 = scalar_lea.vmem %s0, %s209
        %p211 = scmp.lt.s32.totalorder %s18, 1
        %s212 = scalar_select %p211, %s18, 1
        %s213 = smul.addr %s212, 2
        %s214 = smul.addr %s213, 4
        %s215 = scalar_lea.vmem %s1, %s214
        %v217 = vld [vmem:[%s215] sm:$0xf]
        %v218 = vld [vmem:[%s215 + $0x4] sm:$0xf]
        %v219 = vld [vmem:[%s210] sm:$0xf]
        %v220 = vld [vmem:[%s210 + $0x4] sm:$0xf]
        %v223 = vunpack.c.l.b16 %v217
        %v224 = vunpack.c.l.b16 %v218
        %v225 = vpack.c.b16 %v224, %v223
        %v228 = vunpack.c.l.b16 %v219
        %v229 = vunpack.c.l.b16 %v220
        %v230 = vpack.c.b16 %v229, %v228
        %vm232 = vcmask 130048
        %v234 = vsel %vm232, %v225, 0
        %236 = vmatprep.subr.bf16.mxu0 0
        %237 = vmatpush1.bf16.msra.mxu0 %v230
        %238 = vmatprep.subr.bf16.mxu0 0
        %239 = vmatpush1.bf16.msra.mxu0 0
        %240 = vmatprep.subr.bf16.mxu0 0
        %241 = vmatpush1.bf16.msra.mxu0 0
        %242 = vmatprep.subr.bf16.mxu0 0
        %243 = vmatpush1.bf16.msra.mxu0 0
        %244 = vmatprep.subr.bf16.mxu0 0
        %245 = vmatpush1.bf16.msra.mxu0 0
        %246 = vmatprep.subr.bf16.mxu0 0
        %247 = vmatpush1.bf16.msra.mxu0 0
        %248 = vmatprep.subr.bf16.mxu0 0
        %249 = vmatpush1.bf16.msra.mxu0 0
        %250 = vmatprep.subr.bf16.mxu0 0
        %251 = vmatpush1.bf16.msra.mxu0 0
        %252 = vmatprep.subr.bf16.mxu0 0
        %253 = vmatpush1.bf16.msra.mxu0 0
        %254 = vmatprep.subr.bf16.mxu0 0
        %255 = vmatpush1.bf16.msra.mxu0 0
        %256 = vmatprep.subr.bf16.mxu0 0
        %257 = vmatpush1.bf16.msra.mxu0 0
        %258 = vmatprep.subr.bf16.mxu0 0
        %259 = vmatpush1.bf16.msra.mxu0 0
        %260 = vmatprep.subr.bf16.mxu0 0
        %261 = vmatpush1.bf16.msra.mxu0 0
        %262 = vmatprep.subr.bf16.mxu0 0
        %263 = vmatpush1.bf16.msra.mxu0 0
        %264 = vmatprep.subr.bf16.mxu0 0
        %265 = vmatpush1.bf16.msra.mxu0 0
        %266 = vmatprep.subr.bf16.mxu0 0
        %267 = vmatpush1.bf16.msra.mxu0 0
        %268 = vmatprep.mubr.bf16.mxu0 0
        %269 = vmatmul.mubr.bf16.gmra.mrb[0].mxu0 %v234
        %v270 = vpop.f32.mrb[0].mxu0
        %v271 = vadd.f32 0.0, %v270
        %v272 = vpop.f32.mrb[0].mxu0
        %v273 = vpop.f32.mrb[0].mxu0
        %v274 = vadd.f32 0.0, %v273
        %v275 = vpop.f32.mrb[0].mxu0
        %276 = vdwg.mxu0
        %v277 = vunpack.c.l.bf16 %v217
        %v278 = vunpack.c.l.bf16 %v218
        %v279 = vsel %vm232, %v277, 0.0
        %280 = vadd.xlane.f32.xlu0 %v279
        %v281 = vpop.xlane.xlu0 %280
        %v282 = vsel %vm232, %v278, 0.0
        %283 = vadd.xlane.f32.xlu0 %v282
        %v284 = vpop.xlane.xlu0 %283
        %v285 = vld [vmem:[%s2] sm:$0xff]
        %vm286 = vcmask 64512
        %v288 = vsel %vm286, %v271, 0
        %v291 = vsel %vm286, %v274, 0
        %293 = vmatprep.subr.mxu0 0.0
        %294 = vmatpush1.msra.mxu0 %v285
        %295 = vmatprep.subr.mxu0 0.0
        %296 = vmatpush1.msra.mxu0 0.0
        %297 = vmatprep.subr.mxu0 0.0
        %298 = vmatpush1.msra.mxu0 0.0
        %299 = vmatprep.subr.mxu0 0.0
        %300 = vmatpush1.msra.mxu0 0.0
        %301 = vmatprep.subr.mxu0 0.0
        %302 = vmatpush1.msra.mxu0 0.0
        %303 = vmatprep.subr.mxu0 0.0
        %304 = vmatpush1.msra.mxu0 0.0
        %305 = vmatprep.subr.mxu0 0.0
        %306 = vmatpush1.msra.mxu0 0.0
        %307 = vmatprep.subr.mxu0 0.0
        %308 = vmatpush1.msra.mxu0 0.0
        %309 = vmatprep.subr.mxu0 0.0
        %310 = vmatpush1.msra.mxu0 0.0
        %311 = vmatprep.subr.mxu0 0.0
        %312 = vmatpush1.msra.mxu0 0.0
        %313 = vmatprep.subr.mxu0 0.0
        %314 = vmatpush1.msra.mxu0 0.0
        %315 = vmatprep.subr.mxu0 0.0
        %316 = vmatpush1.msra.mxu0 0.0
        %317 = vmatprep.subr.mxu0 0.0
        %318 = vmatpush1.msra.mxu0 0.0
        %319 = vmatprep.subr.mxu0 0.0
        %320 = vmatpush1.msra.mxu0 0.0
        %321 = vmatprep.subr.mxu0 0.0
        %322 = vmatpush1.msra.mxu0 0.0
        %323 = vmatprep.subr.mxu0 0.0
        %324 = vmatpush1.msra.mxu0 0.0
        %325 = vmatprep.subr.mxu0 0.0
        %326 = vmatpush1.msra.mxu0 0.0
        %327 = vmatprep.subr.mxu0 0.0
        %328 = vmatpush1.msra.mxu0 0.0
        %329 = vmatprep.subr.mxu0 0.0
        %330 = vmatpush1.msra.mxu0 0.0
        %331 = vmatprep.subr.mxu0 0.0
        %332 = vmatpush1.msra.mxu0 0.0
        %333 = vmatprep.subr.mxu0 0.0
        %334 = vmatpush1.msra.mxu0 0.0
        %335 = vmatprep.subr.mxu0 0.0
        %336 = vmatpush1.msra.mxu0 0.0
        %337 = vmatprep.subr.mxu0 0.0
        %338 = vmatpush1.msra.mxu0 0.0
        %339 = vmatprep.subr.mxu0 0.0
        %340 = vmatpush1.msra.mxu0 0.0
        %341 = vmatprep.subr.mxu0 0.0
        %342 = vmatpush1.msra.mxu0 0.0
        %343 = vmatprep.subr.mxu0 0.0
        %344 = vmatpush1.msra.mxu0 0.0
        %345 = vmatprep.subr.mxu0 0.0
        %346 = vmatpush1.msra.mxu0 0.0
        %347 = vmatprep.subr.mxu0 0.0
        %348 = vmatpush1.msra.mxu0 0.0
        %349 = vmatprep.subr.mxu0 0.0
        %350 = vmatpush1.msra.mxu0 0.0
        %351 = vmatprep.subr.mxu0 0.0
        %352 = vmatpush1.msra.mxu0 0.0
        %353 = vmatprep.subr.mxu0 0.0
        %354 = vmatpush1.msra.mxu0 0.0
        %355 = vmatprep.subr.mxu0 0.0
        %356 = vmatpush1.msra.mxu0 0.0
        %357 = vmatprep.mubr.f32.mxu0 0.0
        %358 = vmatmul.mubr.f32.gmra.mrb[0].mxu0 %v288
        %v359 = vpop.f32.mrb[0].mxu0
        %v360 = vadd.f32 0.0, %v359
        %v361 = vpop.f32.mrb[0].mxu0
        %362 = vmatprep.mubr.f32.mxu0 0.0
        %363 = vmatmul.mubr.f32.gmra.mrb[0].mxu0 %v291
        %v364 = vpop.f32.mrb[0].mxu0
        %v365 = vadd.f32 0.0, %v364
        %v366 = vpop.f32.mrb[0].mxu0
        %367 = vdwg.mxu0
        %v368 = vld [vmem:[%s3] sm:$0x1]
        %v370 = vlaneseq
        %v371 = vshrl.u32 %v370, 7
        %v372 = vsub.s32 0, %v371
        %v373 = vrot.slane %v368, %v372
        %v375 = vmul.f32 %v281, %v373
        %v376 = vmul.f32 %v284, %v373
        %v377 = vsub.f32 %v360, %v375
        %v378 = vsub.f32 %v365, %v376
        %v379 = vmax.f32 %v377, 0.0
        %v380 = vmax.f32 %v378, 0.0
        %vm381 = vcmask 261120
        %382 = vst.msk [vmem:[%s205] sm:$0xff] %vm381, %v379
        %383 = vst.msk [vmem:[%s205 + $0x8] sm:$0xff] %vm381, %v380
        %s384 = sand.u32 %s120, 1
        %s385 = scalar_lea.sflag [#allocation3], %s384
        %s386 = sand.u32 %s120, 1
        %s387 = smul.addr %s386, 16
        %s388 = scalar_lea.vmem [#allocation2], %s387
        // Predicated region
        $region37: #{tpu_custom_call.1} parent=35 // pred_check
          %p389 = pneg %p130
        $region38: #{tpu_custom_call.1} parent=35 // pred_check_branch
          %391 = sbr.rel (%p389) target = $region40
        $region39: #{tpu_custom_call.1} parent=35 // pred_region
          %s393 = ssub.s32 256, 256
          %394 = vsyncadd %s385, %s393
          %s395 = smul.addr %s18, 2
          %s396 = smul.addr %s395, 128
          %s397 = scalar_lea.hbm %s4, %s396
          %s398 = sshll.u32 %s388, 4
          %s399 = int_to_ptr.vmem [resolvable:$true] %s398
          %404 = dma.vmem_to_hbm [thread:$0]  %s399, 256, %s397, %s385, 128, 128, 8
        $region40: #{tpu_custom_call.1} parent=35 // pred_fallthru
          _
      $region36: #{tpu_custom_call.1} parent=5 // pred_fallthru
        _
      %p405 = scmp.le.s32.totalorder 2, %s13
      // Predicated region
      $region41: #{tpu_custom_call.1} parent=5 // pred_check
        %p406 = pneg %p405
      $region42: #{tpu_custom_call.1} parent=5 // pred_check_branch
        %408 = sbr.rel (%p406) target = $region44
      $region43: #{tpu_custom_call.1} parent=5 // pred_region
        %s409 = ssub.s32 %s13, 2
        // Predicated region
        $region45: #{tpu_custom_call.1} parent=43 // pred_check
          %p410 = pneg %p136
        $region46: #{tpu_custom_call.1} parent=43 // pred_check_branch
          %412 = sbr.rel (%p410) target = $region48
        $region47: #{tpu_custom_call.1} parent=43 // pred_region
          %s413 = sand.u32 %s121, 1
          %s414 = scalar_lea.sflag [#allocation3], %s413
          %s415 = sand.u32 %s121, 1
          %s416 = smul.addr %s415, 16
          %s417 = scalar_lea.vmem [#allocation2], %s416
          %418 = dma.done %s414, 256
        $region48: #{tpu_custom_call.1} parent=43 // pred_fallthru
          _
      $region44: #{tpu_custom_call.1} parent=5 // pred_fallthru
        _
    $region6: #{tpu_custom_call.1} parent=1 // loop_footer
      %s17 = sadd.s32 1, %s13
    $region7: #{tpu_custom_call.1} parent=1 // loop_footer_branch
      %12 = sbr.rel target = $region3
    $region8: #{tpu_custom_call.1} parent=1 // loop_exit
      _
    %419 = vsyncpa [#allocation3], 1
    %s420 = scalar_lea.sflag [#allocation3], 1
    %421 = vsyncpa %s420, 1

</llo_original>
